<compile_context>
chip_gen: v7x
topology: tpu7x:2x2x1
jax: 0.10.0
libtpu: 0.0.40
codegen_flags: <defaults>
</compile_context>

<pallas_src>
import functools

import jax
import jax.numpy as jnp
import numpy as np
from jax.experimental import pallas as pl
from jax.experimental.pallas import tpu as pltpu

BATCH = 2
INPUT_DIM = 32
CLASS_NUM = 4
NEG_SLOPE = 0.1       # nn.LeakyReLU(0.1)
DROPOUT_P = 0.5       # nn.Dropout(p=0.5)

SUBLANE = 8
LANE = 128


# ---------------------------------------------------------------------------
# Kernels
# ---------------------------------------------------------------------------
def _classblock_eval_kernel(x_ref, wb_ref, out_ref, *, input_dim,
                            negative_slope):
    """Eval forward: LeakyReLU -> (Dropout == identity) -> Linear."""
    x = x_ref[...].astype(jnp.float32)
    h = jnp.where(x > 0, x, negative_slope * x)                  # VPU, f32
    w = wb_ref[0:input_dim, :]                                   # (K, 128) bf16
    b = wb_ref[input_dim:input_dim + 1, :].astype(jnp.float32)   # (1, 128)
    out = jnp.dot(h.astype(wb_ref.dtype), w,
                  preferred_element_type=jnp.float32)            # MXU, f32 acc
    out_ref[...] = (out + b).astype(out_ref.dtype)               # lane-dense vst


def _classblock_train_kernel(x_ref, wb_ref, mask_ref, out_ref, *, input_dim,
                             negative_slope, keep_scale):
    """Train forward: LeakyReLU -> Dropout(p) (mask precomputed) -> Linear."""
    x = x_ref[...].astype(jnp.float32)
    h = jnp.where(x > 0, x, negative_slope * x)                  # LeakyReLU
    h = h * mask_ref[...].astype(jnp.float32)                    # keep/zero only
    w = wb_ref[0:input_dim, :]
    b = wb_ref[input_dim:input_dim + 1, :].astype(jnp.float32)
    out = jnp.dot(h.astype(wb_ref.dtype), w,
                  preferred_element_type=jnp.float32)
    # 1/(1-p) applied once to the (M, N) accumulator, not to (M, K) h.
    out_ref[...] = (out * keep_scale + b).astype(out_ref.dtype)


# ---------------------------------------------------------------------------
# Parameter packing / wrapper
# ---------------------------------------------------------------------------
def _round_up(n, m):
    return -(-n // m) * m


def pack_params(w, b):
    """Pack nn.Linear weight/bias into one lane-dense bf16 slab.

    w: (input_dim, class_num)  b: (class_num,)
    Returns (rows, 128) bf16 where rows = round_up(input_dim+1, 8);
    row `input_dim` holds the bias, everything else past class_num is zero.
    """
    k, n = w.shape
    n_pad = _round_up(max(n, LANE), LANE)
    rows = _round_up(k + 1, SUBLANE)
    wb = jnp.zeros((rows, n_pad), jnp.float32)
    wb = wb.at[:k, :n].set(w.astype(jnp.float32))
    wb = wb.at[k, :n].set(b.astype(jnp.float32))
    return wb.astype(jnp.bfloat16)


def classblock_forward(x, wb_packed, class_num, *, training=False,
                       dropout_p=DROPOUT_P, dropout_rng=None):
    """Fused ClassBlock forward.  x: (B, input_dim) f32."""
    batch, input_dim = x.shape
    m_pad = _round_up(max(batch, SUBLANE), SUBLANE)
    n_pad = wb_packed.shape[1]

    x_p = jnp.pad(x, ((0, m_pad - batch), (0, 0)))
    vmem = pl.BlockSpec(memory_space=pltpu.MemorySpace.VMEM)
    out_shape = jax.ShapeDtypeStruct((m_pad, n_pad), jnp.float32)

    if not training:
        kernel = functools.partial(_classblock_eval_kernel,
                                   input_dim=input_dim,
                                   negative_slope=NEG_SLOPE)
        out = pl.pallas_call(
            kernel,
            out_shape=out_shape,
            in_specs=[vmem, vmem],
            out_specs=vmem,
        )(x_p, wb_packed)
    else:
        assert 0.0 <= dropout_p < 1.0, "dropout p must be in [0, 1)"
        assert dropout_rng is not None
        keep = jax.random.bernoulli(dropout_rng, 1.0 - dropout_p,
                                    (m_pad, input_dim))
        mask = keep.astype(jnp.bfloat16)            # {0,1} exact in bf16
        kernel = functools.partial(_classblock_train_kernel,
                                   input_dim=input_dim,
                                   negative_slope=NEG_SLOPE,
                                   keep_scale=1.0 / (1.0 - dropout_p))
        out = pl.pallas_call(
            kernel,
            out_shape=out_shape,
            in_specs=[vmem, vmem, vmem],
            out_specs=vmem,
        )(x_p, wb_packed, mask)

    return out[:batch, :class_num]


# ---------------------------------------------------------------------------
# Pure-JAX references (same bf16 rounding as the kernel)
# ---------------------------------------------------------------------------
def reference_eval(x, wb_packed, class_num):
    k = x.shape[1]
    h = jnp.where(x > 0, x, NEG_SLOPE * x)
    h = h.astype(jnp.bfloat16).astype(jnp.float32)
    w = wb_packed[:k, :].astype(jnp.float32)
    b = wb_packed[k, :].astype(jnp.float32)
    return (h @ w + b)[:, :class_num]


def reference_train(x, wb_packed, class_num, mask, p):
    k = x.shape[1]
    h = jnp.where(x > 0, x, NEG_SLOPE * x)
    h = h * mask[: x.shape[0], :].astype(jnp.float32)
    h = h.astype(jnp.bfloat16).astype(jnp.float32)
    w = wb_packed[:k, :].astype(jnp.float32)
    b = wb_packed[k, :].astype(jnp.float32)
    return (h @ w * (1.0 / (1.0 - p)) + b)[:, :class_num]


# ---------------------------------------------------------------------------
if __name__ == "__main__":
    key = jax.random.PRNGKey(0)
    kw, kx, kd = jax.random.split(key, 3)

    # weights_init_classifier: Linear weight ~ N(0, 0.001), bias zero.
    w = 0.001 * jax.random.normal(kw, (INPUT_DIM, CLASS_NUM), jnp.float32)
    b = jnp.zeros((CLASS_NUM,), jnp.float32)
    wb_packed = pack_params(w, b)

    x = jax.random.normal(kx, (BATCH, INPUT_DIM), jnp.float32)

    # Eval-mode (deterministic) path.
    out_eval = jax.block_until_ready(
        classblock_forward(x, wb_packed, CLASS_NUM, training=False))
    assert out_eval.shape == (BATCH, CLASS_NUM)
    ref_eval = np.asarray(reference_eval(x, wb_packed, CLASS_NUM))
    np.testing.assert_allclose(np.asarray(out_eval), ref_eval,
                               rtol=1e-3, atol=1e-6)

    # Training-mode path (dropout mask generated host-side, fused in-kernel).
    m_pad = _round_up(max(BATCH, SUBLANE), SUBLANE)
    keep = jax.random.bernoulli(kd, 1.0 - DROPOUT_P, (m_pad, INPUT_DIM))
    out_train = jax.block_until_ready(
        classblock_forward(x, wb_packed, CLASS_NUM, training=True,
                           dropout_p=DROPOUT_P, dropout_rng=kd))
    assert out_train.shape == (BATCH, CLASS_NUM)
    ref_train = np.asarray(reference_train(
        x, wb_packed, CLASS_NUM, keep.astype(jnp.bfloat16), DROPOUT_P))
    np.testing.assert_allclose(np.asarray(out_train), ref_train,
                               rtol=1e-3, atol=1e-6)

    print("KERNEL_OK")
</pallas_src>

<mosaic_0001>
module attributes {stable_mosaic.version = 11 : i64} {
  func.func @_classblock_eval_kernel(%arg0: memref<8x32xf32, #tpu.memory_space<vmem>>, %arg1: memref<40x128xbf16, #tpu.memory_space<vmem>>, %arg2: memref<8x128xf32, #tpu.memory_space<vmem>>) attributes {dimension_semantics = [], scalar_prefetch = 0 : i64, scratch_operands = 0 : i64, tpu.core_type = #tpu.core_type<tc>} {
    %c0 = arith.constant 0 : index
    %c0_0 = arith.constant 0 : index
    %0 = vector.load %arg0[%c0, %c0_0] : memref<8x32xf32, #tpu.memory_space<vmem>>, vector<8x32xf32>
    %cst = arith.constant 0.000000e+00 : f32
    %1 = vector.broadcast %cst : f32 to vector<8x32xf32>
    %2 = arith.cmpf ogt, %0, %1 : vector<8x32xf32>
    %cst_1 = arith.constant 1.000000e-01 : f32
    %3 = vector.broadcast %cst_1 : f32 to vector<8x32xf32>
    %4 = arith.mulf %3, %0 : vector<8x32xf32>
    %5 = arith.select %2, %0, %4 : vector<8x32xi1>, vector<8x32xf32>
    %c0_2 = arith.constant 0 : index
    %c0_3 = arith.constant 0 : index
    %6 = vector.load %arg1[%c0_2, %c0_3] : memref<40x128xbf16, #tpu.memory_space<vmem>>, vector<32x128xbf16>
    %c32 = arith.constant 32 : index
    %c0_4 = arith.constant 0 : index
    %7 = vector.load %arg1[%c32, %c0_4] : memref<40x128xbf16, #tpu.memory_space<vmem>>, vector<1x128xbf16>
    %8 = arith.extf %7 : vector<1x128xbf16> to vector<1x128xf32>
    %9 = arith.truncf %5 : vector<8x32xf32> to vector<8x32xbf16>
    %cst_5 = arith.constant dense<0.000000e+00> : vector<8x128xf32>
    %10 = tpu.matmul %9, %6, %cst_5 {dimension_numbers = #tpu.dot_dimension_numbers<[1], [0], [0], [1], [0, 0, 1, 1], [], []>} : vector<8x32xbf16>, vector<32x128xbf16>, vector<8x128xf32> -> vector<8x128xf32>
    %11 = vector.broadcast %8 : vector<1x128xf32> to vector<8x128xf32>
    %12 = arith.addf %10, %11 : vector<8x128xf32>
    %c0_6 = arith.constant 0 : index
    %c0_7 = arith.constant 0 : index
    %13 = vector.load %arg2[%c0_6, %c0_7] : memref<8x128xf32, #tpu.memory_space<vmem>>, vector<8x128xf32>
    tpu.vector_store %arg2[%c0_6, %c0_7], %12 {strides = array<i32>} : memref<8x128xf32, #tpu.memory_space<vmem>>, vector<8x128xf32>,
    return
  }
}

</mosaic_0001>

<llo_original>
// kernel: tpu_custom_call.1
$region0: #{tpu_custom_call.1}
  #allocation0 [shape = 'u32[]', space=smem, size = 0x4, offset = 0x4, fixed_abs, tag = 'smem constant byte address 0x4 - core index']
  #allocation1 [shape = 'u32[144,128]{1,0:T(1,128)}', space=vmem, size = 0x12000, scoped, tag = 'internal scratch']
  %s0 = inlined_call_operand.hbm [shape: f32[8,32], index: 0, kind: input, shape index: {}]
  %s1 = inlined_call_operand.hbm [shape: bf16[40,128], index: 1, kind: input, shape index: {}]
  %s2 = inlined_call_operand.hbm [shape: f32[8,128], index: 2, kind: output, shape index: {}]
  %s3 = sld [smem:[#allocation0]]
  $region26: #{tpu_custom_call.1} parent=0
    _
  %s5 = ssub.s32 1, %s3
  %s6 = scalar_select 0, %s5, %s3
  $region1: #{tpu_custom_call.1} parent=0
    #allocation2 [shape = 'u8[4096]{0}', space=vmem, size = 0x1000, scoped, tag = 'input window, operand 0, single buffered']
    #allocation3 [shape = 's32[1]{0}', space=sflag, size = 0x4, scoped, tag = 'scoped memory for tpu_custom_call.1']
    #allocation4 [shape = 's32[1]{0}', space=sflag, size = 0x4, scoped, tag = 'scoped memory for tpu_custom_call.1']
    #allocation5 [shape = 'u8[10240]{0}', space=vmem, size = 0x2800, scoped, tag = 'input window, operand 1, single buffered']
    #allocation6 [shape = 's32[1]{0}', space=sflag, size = 0x4, scoped, tag = 'scoped memory for tpu_custom_call.1']
    #allocation7 [shape = 'u8[4096]{0}', space=vmem, size = 0x1000, scoped, tag = 'output window, operand 0, single buffered']
    %7 = vsyncpa [#allocation3], 0
    %8 = vsyncpa [#allocation6], 0
    %9 = vsyncpa [#allocation4], 0
    // Predicated region
    $region2: #{tpu_custom_call.1} parent=1 // pred_check
      _
    $region3: #{tpu_custom_call.1} parent=1 // pred_check_branch
      %11 = sbr.rel (0) target = $region5
    $region4: #{tpu_custom_call.1} parent=1 // pred_region
      %s13 = ssub.s32 128, 128
      %14 = vsyncadd [#allocation3], %s13
      %s16 = sshll.u32 [#allocation2], 4
      %s17 = int_to_ptr.vmem [resolvable:$true] %s16
      %19 = dma.hbm_to_vmem [thread:$0]  %s0, 128, %s17, [#allocation3]
    $region5: #{tpu_custom_call.1} parent=1 // pred_fallthru
      _
    // Predicated region
    $region6: #{tpu_custom_call.1} parent=1 // pred_check
      _
    $region7: #{tpu_custom_call.1} parent=1 // pred_check_branch
      %21 = sbr.rel (0) target = $region9
    $region8: #{tpu_custom_call.1} parent=1 // pred_region
      %s23 = ssub.s32 320, 320
      %24 = vsyncadd [#allocation6], %s23
      %s25 = sshll.u32 [#allocation5], 4
      %s26 = int_to_ptr.vmem [resolvable:$true] %s25
      %31 = dma.hbm_to_vmem [thread:$0]  %s1, 320, %s26, [#allocation6], 64, 64, 4
    $region9: #{tpu_custom_call.1} parent=1 // pred_fallthru
      _
    // Predicated region
    $region10: #{tpu_custom_call.1} parent=1 // pred_check
      _
    $region11: #{tpu_custom_call.1} parent=1 // pred_check_branch
      %33 = sbr.rel (0) target = $region13
    $region12: #{tpu_custom_call.1} parent=1 // pred_region
      %34 = dma.done [#allocation3], 128
    $region13: #{tpu_custom_call.1} parent=1 // pred_fallthru
      _
    // Predicated region
    $region14: #{tpu_custom_call.1} parent=1 // pred_check
      _
    $region15: #{tpu_custom_call.1} parent=1 // pred_check_branch
      %36 = sbr.rel (0) target = $region17
    $region16: #{tpu_custom_call.1} parent=1 // pred_region
      %37 = dma.done [#allocation6], 320
    $region17: #{tpu_custom_call.1} parent=1 // pred_fallthru
      _
    %v39 = vld [vmem:[#allocation2] sm:$0xff]
    %vm40 = vcmp.gt.f32.partialorder %v39, 0.0
    %v41 = vmul.f32 %v39, 0.1
    %v42 = vsel %vm40, %v39, %v41
    %v43 = vld [vmem:[#allocation5] sm:$0xf]
    %v44 = vld [vmem:[#allocation5 + $0x4] sm:$0xf]
    %v45 = vld [vmem:[#allocation5 + $0x8] sm:$0xf]
    %v46 = vld [vmem:[#allocation5 + $0xc] sm:$0xf]
    %v47 = vld [vmem:[#allocation5 + $0x10] sm:$0x1]
    %v48 = vunpack.c.l.bf16 %v47
    %v49 = vpack.c.bf16 %v42, %v42
    %v50 = vlaneseq
    %v51 = vshrl.u32 %v50, 7
    %v52 = vsub.s32 0, %v51
    %v53 = vrot.slane %v48, %v52
    %v58 = vunpack.c.l.b16 %v43
    %v59 = vunpack.c.l.b16 %v44
    %v60 = vunpack.c.l.b16 %v45
    %v61 = vunpack.c.l.b16 %v46
    %v62 = vpack.c.b16 %v59, %v58
    %v63 = vpack.c.b16 %v61, %v60
    %vm66 = vcmask 261120
    %v68 = vsel %vm66, %v49, 0
    %70 = vmatprep.subr.bf16.mxu0 0
    %71 = vmatpush1.bf16.msra.mxu0 %v62
    %72 = vmatprep.subr.bf16.mxu0 0
    %73 = vmatpush1.bf16.msra.mxu0 %v63
    %74 = vmatprep.subr.bf16.mxu0 0
    %75 = vmatpush1.bf16.msra.mxu0 0
    %76 = vmatprep.subr.bf16.mxu0 0
    %77 = vmatpush1.bf16.msra.mxu0 0
    %78 = vmatprep.subr.bf16.mxu0 0
    %79 = vmatpush1.bf16.msra.mxu0 0
    %80 = vmatprep.subr.bf16.mxu0 0
    %81 = vmatpush1.bf16.msra.mxu0 0
    %82 = vmatprep.subr.bf16.mxu0 0
    %83 = vmatpush1.bf16.msra.mxu0 0
    %84 = vmatprep.subr.bf16.mxu0 0
    %85 = vmatpush1.bf16.msra.mxu0 0
    %86 = vmatprep.subr.bf16.mxu0 0
    %87 = vmatpush1.bf16.msra.mxu0 0
    %88 = vmatprep.subr.bf16.mxu0 0
    %89 = vmatpush1.bf16.msra.mxu0 0
    %90 = vmatprep.subr.bf16.mxu0 0
    %91 = vmatpush1.bf16.msra.mxu0 0
    %92 = vmatprep.subr.bf16.mxu0 0
    %93 = vmatpush1.bf16.msra.mxu0 0
    %94 = vmatprep.subr.bf16.mxu0 0
    %95 = vmatpush1.bf16.msra.mxu0 0
    %96 = vmatprep.subr.bf16.mxu0 0
    %97 = vmatpush1.bf16.msra.mxu0 0
    %98 = vmatprep.subr.bf16.mxu0 0
    %99 = vmatpush1.bf16.msra.mxu0 0
    %100 = vmatprep.subr.bf16.mxu0 0
    %101 = vmatpush1.bf16.msra.mxu0 0
    %102 = vmatprep.mubr.bf16.mxu0 0
    %103 = vmatmul.mubr.bf16.gmra.mrb[0].mxu0 %v68
    %v104 = vpop.f32.mrb[0].mxu0
    %v105 = vadd.f32 %v53, %v104
    %v106 = vpop.f32.mrb[0].mxu0
    %v107 = vpop.f32.mrb[0].mxu0
    %v108 = vpop.f32.mrb[0].mxu0
    %109 = vdwg.mxu0
    %110 = vst [vmem:[#allocation7] sm:$0xff] %v105
    // Predicated region
    $region18: #{tpu_custom_call.1} parent=1 // pred_check
      _
    $region19: #{tpu_custom_call.1} parent=1 // pred_check_branch
      %112 = sbr.rel (0) target = $region21
    $region20: #{tpu_custom_call.1} parent=1 // pred_region
      %s114 = ssub.s32 128, 128
      %115 = vsyncadd [#allocation4], %s114
      %s117 = sshll.u32 [#allocation7], 4
      %s118 = int_to_ptr.vmem [resolvable:$true] %s117
      %120 = dma.vmem_to_hbm [thread:$0]  %s118, 128, %s2, [#allocation4]
    $region21: #{tpu_custom_call.1} parent=1 // pred_fallthru
      _
    // Predicated region
    $region22: #{tpu_custom_call.1} parent=1 // pred_check
      _
    $region23: #{tpu_custom_call.1} parent=1 // pred_check_branch
      %122 = sbr.rel (0) target = $region25
    $region24: #{tpu_custom_call.1} parent=1 // pred_region
      %123 = dma.done [#allocation4], 128
    $region25: #{tpu_custom_call.1} parent=1 // pred_fallthru
      _
    %124 = vsyncpa [#allocation3], 1
    %125 = vsyncpa [#allocation6], 1
    %126 = vsyncpa [#allocation4], 1

</llo_original>
